<compile_context>
chip_gen: v5e
topology: v5e:2x2
jax: 0.10.0
libtpu: 0.0.40
codegen_flags: <defaults>
</compile_context>

<pallas_src>
import jax
import jax.numpy as jnp
from jax.experimental import pallas as pl
from jax.experimental.pallas import tpu as pltpu


def classifier_kernel(patches_ref, wconv_ref, bconv_ref, whead_ref, bhead_ref,
                      unpooled_ref, pooled_ref, probs_ref, pooled_sc):
    """Fused conv-as-matmul + ReLU + global-avg-pool + linear + softmax.

    Per grid step (bblk = batch block):
      patches_ref : [P, bblk*HW]       bf16/f32   im2col patches (batched, lane-dense)
      wconv_ref   : [Chid, P]          bf16/f32   conv weight^T
      bconv_ref   : [Chid, 1]          f32
      whead_ref   : [nclass, Chid]     f32        head weight^T
      bhead_ref   : [nclass, 1]        f32
      unpooled_ref: [bblk, Chid, HW]   f32/bf16   lane-dense NCHW features
      pooled_ref  : [1, Chid, bblk]    f32        lane-dense pooled slab
      probs_ref   : [1, nclass, bblk]  f32        lane-dense softmax slab
      pooled_sc   : [Chid, bblk]       f32        VMEM scratch
    """
    bblk, _, hw = unpooled_ref.shape

    # One wide-N MXU matmul for the whole batch block (weight pushed once).
    feat_all = jnp.dot(wconv_ref[...], patches_ref[...],
                       preferred_element_type=jnp.float32)        # [Chid, bblk*HW]
    feat_all = jnp.maximum(feat_all + bconv_ref[...], 0.0)        # bias + ReLU (f32)

    # Per-sample static, lane-aligned 256-lane slices: lane-dense NCHW stores
    # plus AdaptiveAvgPool2d(1) (lane reduce -> column into VMEM scratch).
    for s in range(bblk):
        feat_s = feat_all[:, s * hw:(s + 1) * hw]                 # [Chid, HW]
        unpooled_ref[s] = feat_s.astype(unpooled_ref.dtype)
        pooled_sc[:, s:s + 1] = jnp.mean(feat_s, axis=-1, keepdims=True)

    pooled_t = pooled_sc[...]                                     # [Chid, bblk]
    pooled_ref[0] = pooled_t.astype(pooled_ref.dtype)             # lane-dense slab

    # Batched classification head + exact softmax over classes (sublane axis).
    logits_t = jnp.dot(whead_ref[...], pooled_t,
                       preferred_element_type=jnp.float32) + bhead_ref[...]
    m = jnp.max(logits_t, axis=0, keepdims=True)
    e = jnp.exp(logits_t - m)
    probs_t = e / jnp.sum(e, axis=0, keepdims=True)               # exact divide
    probs_ref[0] = probs_t.astype(probs_ref.dtype)                # lane-dense slab


def _im2col_pbhw(x_nchw, k):
    """[B, Cin, H, W] -> [Cin*k*k, B*H*W] patches.

    Patch-axis (row) order is (dy, dx, c); column order is (b, h, w).
    """
    B, Cin, H, W = x_nchw.shape
    pad = k // 2
    xp = jnp.pad(x_nchw, ((0, 0), (0, 0), (pad, pad), (pad, pad)))
    shards = [xp[:, :, dy:dy + H, dx:dx + W]
              for dy in range(k) for dx in range(k)]
    patches = jnp.stack(shards, axis=0)                 # [k*k, B, Cin, H, W]
    patches = patches.transpose(0, 2, 1, 3, 4)          # [k*k, Cin, B, H, W]
    return patches.reshape(k * k * Cin, B * H * W)


def _device_kind():
    try:
        return jax.devices()[0].device_kind.lower()
    except Exception:
        return ""


def basic_classifier_forward(x_nchw, params, *, matmul_dtype=jnp.bfloat16,
                             unpooled_dtype=jnp.float32):
    """x_nchw: [B, Cin, H, W] float32. Returns dict(logits, feats, unpooled_feats).

    matmul_dtype / unpooled_dtype are opt-in accuracy/bandwidth trade-offs
    (bf16 patches halve im2col HBM traffic; bf16 unpooled halves the dominant
    HBM write).  Defaults keep f32 features to match the PyTorch reference.
    """
    B, Cin, H, W = x_nchw.shape
    K = 3
    wconv = params["wconv"]              # [Cin*K*K, Chid], patch order (dy, dx, c)
    bconv = params["bconv"]              # [1, Chid]
    whead = params["whead"]              # [Chid, nclass]
    bhead = params["bhead"]              # [1, nclass]
    Chid = wconv.shape[1]
    nclass = whead.shape[1]
    HW = H * W
    P = Cin * K * K

    # --- glue: im2col in batched [P, B*HW] layout; low-precision matmul operands ---
    patches = _im2col_pbhw(x_nchw, K).astype(matmul_dtype)        # [P, B*HW]
    wconv_t = wconv.T.astype(matmul_dtype)                        # [Chid, P]
    bconv_c = bconv.reshape(Chid, 1).astype(jnp.float32)
    whead_t = whead.T.astype(jnp.float32)                         # [nclass, Chid]
    bhead_c = bhead.reshape(nclass, 1).astype(jnp.float32)

    # --- per-generation tiling: v7x has 2 TensorCores and half the VMEM ---
    kind = _device_kind()
    two_tensorcores = "v7" in kind
    vmem_budget = (24 if two_tensorcores else 48) * 1024 * 1024   # block budget
    vmem_limit = (40 if two_tensorcores else 64) * 1024 * 1024    # compiler limit

    in_bytes = jnp.dtype(matmul_dtype).itemsize
    unp_bytes = jnp.dtype(unpooled_dtype).itemsize
    per_sample = (2 * P * HW * in_bytes          # double-buffered patches block
                  + 2 * Chid * HW * unp_bytes    # double-buffered unpooled block
                  + Chid * HW * 4                # f32 feat_all intermediate
                  + 2 * (Chid + nclass) * 4)     # pooled / probs blocks
    bblk = int(max(1, min(B, vmem_budget // max(per_sample, 1))))
    if two_tensorcores and B >= 2:
        # keep >= 2 grid steps only when there are 2 TCs to feed (v7x)
        bblk = min(bblk, max(1, B // 2))
    while B % bblk:
        bblk -= 1
    nsteps = B // bblk

    dim_sem = (pltpu.CORE_PARALLEL,) if two_tensorcores else ("parallel",)

    out_shapes = (
        jax.ShapeDtypeStruct((B, Chid, HW), unpooled_dtype),       # unpooled (NCHW, flat)
        jax.ShapeDtypeStruct((nsteps, Chid, bblk), jnp.float32),   # pooled slabs
        jax.ShapeDtypeStruct((nsteps, nclass, bblk), jnp.float32), # softmax slabs
    )

    cost = pl.CostEstimate(
        flops=2 * B * Chid * P * HW + 2 * B * nclass * Chid,
        transcendentals=B * nclass,
        bytes_accessed=(patches.size * in_bytes + wconv_t.size * in_bytes
                        + (bconv_c.size + whead_t.size + bhead_c.size) * 4
                        + B * Chid * HW * unp_bytes
                        + B * (Chid + nclass) * 4),
    )

    unpooled, pooled, probs = pl.pallas_call(
        classifier_kernel,
        out_shape=out_shapes,
        grid_spec=pltpu.PrefetchScalarGridSpec(
            num_scalar_prefetch=0,
            grid=(nsteps,),
            in_specs=[
                pl.BlockSpec((P, bblk * HW), lambda b: (0, b)),    # patches block
                pl.BlockSpec((Chid, P), lambda b: (0, 0)),         # conv weight^T
                pl.BlockSpec((Chid, 1), lambda b: (0, 0)),         # conv bias
                pl.BlockSpec((nclass, Chid), lambda b: (0, 0)),    # head weight^T
                pl.BlockSpec((nclass, 1), lambda b: (0, 0)),       # head bias
            ],
            out_specs=[
                pl.BlockSpec((bblk, Chid, HW), lambda b: (b, 0, 0)),
                pl.BlockSpec((1, Chid, bblk), lambda b: (b, 0, 0)),
                pl.BlockSpec((1, nclass, bblk), lambda b: (b, 0, 0)),
            ],
            scratch_shapes=[pltpu.VMEM((Chid, bblk), jnp.float32)],
        ),
        compiler_params=pltpu.CompilerParams(
            dimension_semantics=dim_sem,
            vmem_limit_bytes=vmem_limit,
        ),
        cost_estimate=cost,
    )(patches, wconv_t, bconv_c, whead_t, bhead_c)

    # Tiny wrapper-side layout fixes on the small tensors only.
    feats = pooled.transpose(0, 2, 1).reshape(B, Chid)
    probs_bc = probs.transpose(0, 2, 1).reshape(B, nclass)

    return dict(
        # NOTE: matches the reference module -- these are post-softmax probabilities.
        logits=probs_bc,
        feats=feats,
        unpooled_feats=unpooled.reshape(B, Chid, H, W),   # already NCHW, no transpose
    )


def _reference_forward(x_nchw, params):
    """Independent pure-JAX f32 reference (real conv, not im2col)."""
    B, Cin, H, W = x_nchw.shape
    K = 3
    Chid = params["wconv"].shape[1]
    w_hwio = params["wconv"].reshape(K, K, Cin, Chid)    # (dy, dx, c, out)
    feat = jax.lax.conv_general_dilated(
        x_nchw, w_hwio, window_strides=(1, 1), padding="SAME",
        dimension_numbers=("NCHW", "HWIO", "NCHW"))
    feat = jnp.maximum(feat + params["bconv"].reshape(1, Chid, 1, 1), 0.0)
    pooled = feat.mean(axis=(2, 3))
    logits = pooled @ params["whead"] + params["bhead"]
    return jax.nn.softmax(logits, axis=-1), pooled, feat


if __name__ == "__main__":
    # Small shapes consistent with the module: batch=2, in_channels=4,
    # spatial=16x16, encoder out_channels=32, class_num=8.
    B, Cin, H, W = 2, 4, 16, 16
    Chid, nclass, K = 32, 8, 3

    key = jax.random.PRNGKey(0)
    kx, k1, k2, k3, k4 = jax.random.split(key, 5)

    x = jax.random.normal(kx, (B, Cin, H, W), jnp.float32)
    params = dict(
        wconv=jax.random.normal(k1, (Cin * K * K, Chid), jnp.float32) * 0.1,
        bconv=jax.random.normal(k2, (1, Chid), jnp.float32) * 0.01,
        whead=jax.random.normal(k3, (Chid, nclass), jnp.float32) * 0.1,
        bhead=jax.random.normal(k4, (1, nclass), jnp.float32) * 0.01,
    )

    fwd = jax.jit(lambda xx: basic_classifier_forward(xx, params))
    out = jax.block_until_ready(fwd(x))

    assert out["logits"].shape == (B, nclass)
    assert out["feats"].shape == (B, Chid)
    assert out["unpooled_feats"].shape == (B, Chid, H, W)
    # softmax rows sum to 1 (exact f32 divide in the kernel)
    assert bool(jnp.all(jnp.abs(jnp.sum(out["logits"], axis=-1) - 1.0) < 1e-3))

    # numerical check vs an independent f32 reference (bf16 matmul operands
    # for the conv => loose tolerances on features)
    ref_probs, ref_pooled, ref_unpooled = _reference_forward(x, params)
    assert float(jnp.max(jnp.abs(out["logits"] - ref_probs))) < 2e-2
    assert float(jnp.max(jnp.abs(out["feats"] - ref_pooled))) < 5e-2
    assert float(jnp.max(jnp.abs(out["unpooled_feats"] - ref_unpooled))) < 5e-2

    print("KERNEL_OK")
</pallas_src>

<mosaic_0001>
module attributes {stable_mosaic.version = 11 : i64} {
  func.func @classifier_kernel(%arg0: i32, %arg1: memref<36x512xbf16, #tpu.memory_space<vmem>>, %arg2: memref<32x36xbf16, #tpu.memory_space<vmem>>, %arg3: memref<32x1xf32, #tpu.memory_space<vmem>>, %arg4: memref<8x32xf32, #tpu.memory_space<vmem>>, %arg5: memref<8x1xf32, #tpu.memory_space<vmem>>, %arg6: memref<2x32x256xf32, #tpu.memory_space<vmem>>, %arg7: memref<1x32x2xf32, #tpu.memory_space<vmem>>, %arg8: memref<1x8x2xf32, #tpu.memory_space<vmem>>, %arg9: memref<32x2xf32, #tpu.memory_space<vmem>>) attributes {dimension_semantics = [#tpu.dimension_semantics<parallel>], iteration_bounds = array<i64: 1>, scalar_prefetch = 0 : i64, scratch_operands = 1 : i64, tpu.core_type = #tpu.core_type<tc>, window_params = [{transform_indices = @transform_0, window_bounds = array<i64: 36, 512>}, {pipeline_mode = #tpu.pipeline_mode<synchronous>, transform_indices = @transform_1, window_bounds = array<i64: 32, 36>}, {pipeline_mode = #tpu.pipeline_mode<synchronous>, transform_indices = @transform_2, window_bounds = array<i64: 32, 1>}, {pipeline_mode = #tpu.pipeline_mode<synchronous>, transform_indices = @transform_3, window_bounds = array<i64: 8, 32>}, {pipeline_mode = #tpu.pipeline_mode<synchronous>, transform_indices = @transform_4, window_bounds = array<i64: 8, 1>}, {transform_indices = @transform_5, window_bounds = array<i64: 2, 32, 256>}, {transform_indices = @transform_6, window_bounds = array<i64: 1, 32, 2>}, {transform_indices = @transform_7, window_bounds = array<i64: 1, 8, 2>}]} {
    %c0 = arith.constant 0 : index
    %c0_0 = arith.constant 0 : index
    %0 = vector.load %arg2[%c0, %c0_0] : memref<32x36xbf16, #tpu.memory_space<vmem>>, vector<32x36xbf16>
    %c0_1 = arith.constant 0 : index
    %c0_2 = arith.constant 0 : index
    %1 = vector.load %arg1[%c0_1, %c0_2] : memref<36x512xbf16, #tpu.memory_space<vmem>>, vector<36x512xbf16>
    %cst = arith.constant dense<0.000000e+00> : vector<32x512xf32>
    %2 = tpu.matmul %0, %1, %cst {dimension_numbers = #tpu.dot_dimension_numbers<[1], [0], [0], [1], [0, 0, 1, 1], [], []>} : vector<32x36xbf16>, vector<36x512xbf16>, vector<32x512xf32> -> vector<32x512xf32>
    %c0_3 = arith.constant 0 : index
    %c0_4 = arith.constant 0 : index
    %3 = vector.load %arg3[%c0_3, %c0_4] : memref<32x1xf32, #tpu.memory_space<vmem>>, vector<32x1xf32>
    %4 = vector.broadcast %3 : vector<32x1xf32> to vector<32x512xf32>
    %5 = arith.addf %2, %4 : vector<32x512xf32>
    %cst_5 = arith.constant 0.000000e+00 : f32
    %6 = vector.broadcast %cst_5 : f32 to vector<32x512xf32>
    %7 = arith.maximumf %5, %6 : vector<32x512xf32>
    %8 = vector.extract_strided_slice %7 {offsets = [0, 0], sizes = [32, 256], strides = [1, 1]} : vector<32x512xf32> to vector<32x256xf32>
    %c0_6 = arith.constant 0 : index
    %c0_7 = arith.constant 0 : index
    %c0_8 = arith.constant 0 : index
    %9 = vector.load %arg6[%c0_6, %c0_7, %c0_8] : memref<2x32x256xf32, #tpu.memory_space<vmem>>, vector<1x32x256xf32>
    %10 = vector.shape_cast %9 : vector<1x32x256xf32> to vector<32x256xf32>
    %11 = vector.shape_cast %8 : vector<32x256xf32> to vector<1x32x256xf32>
    tpu.vector_store %arg6[%c0_6, %c0_7, %c0_8], %11 {strides = array<i32>} : memref<2x32x256xf32, #tpu.memory_space<vmem>>, vector<1x32x256xf32>,
    %cst_9 = arith.constant dense<0.000000e+00> : vector<32xf32>
    %12 = vector.multi_reduction <add>, %8, %cst_9 [1] : vector<32x256xf32> to vector<32xf32>
    %13 = vector.shape_cast %12 : vector<32xf32> to vector<32x1xf32>
    %cst_10 = arith.constant 2.560000e+02 : f32
    %14 = vector.broadcast %cst_10 : f32 to vector<32x1xf32>
    %15 = arith.divf %13, %14 : vector<32x1xf32>
    %c0_11 = arith.constant 0 : index
    %c0_12 = arith.constant 0 : index
    %16 = vector.load %arg9[%c0_11, %c0_12] : memref<32x2xf32, #tpu.memory_space<vmem>>, vector<32x1xf32>
    tpu.vector_store %arg9[%c0_11, %c0_12], %15 {strides = array<i32>} : memref<32x2xf32, #tpu.memory_space<vmem>>, vector<32x1xf32>,
    %17 = vector.extract_strided_slice %7 {offsets = [0, 256], sizes = [32, 256], strides = [1, 1]} : vector<32x512xf32> to vector<32x256xf32>
    %c1 = arith.constant 1 : index
    %c0_13 = arith.constant 0 : index
    %c0_14 = arith.constant 0 : index
    %18 = vector.load %arg6[%c1, %c0_13, %c0_14] : memref<2x32x256xf32, #tpu.memory_space<vmem>>, vector<1x32x256xf32>
    %19 = vector.shape_cast %18 : vector<1x32x256xf32> to vector<32x256xf32>
    %20 = vector.shape_cast %17 : vector<32x256xf32> to vector<1x32x256xf32>
    tpu.vector_store %arg6[%c1, %c0_13, %c0_14], %20 {strides = array<i32>} : memref<2x32x256xf32, #tpu.memory_space<vmem>>, vector<1x32x256xf32>,
    %cst_15 = arith.constant dense<0.000000e+00> : vector<32xf32>
    %21 = vector.multi_reduction <add>, %17, %cst_15 [1] : vector<32x256xf32> to vector<32xf32>
    %22 = vector.shape_cast %21 : vector<32xf32> to vector<32x1xf32>
    %cst_16 = arith.constant 2.560000e+02 : f32
    %23 = vector.broadcast %cst_16 : f32 to vector<32x1xf32>
    %24 = arith.divf %22, %23 : vector<32x1xf32>
    %c0_17 = arith.constant 0 : index
    %c1_18 = arith.constant 1 : index
    %25 = vector.load %arg9[%c0_17, %c1_18] : memref<32x2xf32, #tpu.memory_space<vmem>>, vector<32x1xf32>
    tpu.vector_store %arg9[%c0_17, %c1_18], %24 {strides = array<i32>} : memref<32x2xf32, #tpu.memory_space<vmem>>, vector<32x1xf32>,
    %c0_19 = arith.constant 0 : index
    %c0_20 = arith.constant 0 : index
    %26 = vector.load %arg9[%c0_19, %c0_20] : memref<32x2xf32, #tpu.memory_space<vmem>>, vector<32x2xf32>
    %c0_21 = arith.constant 0 : index
    %c0_22 = arith.constant 0 : index
    %c0_23 = arith.constant 0 : index
    %27 = vector.load %arg7[%c0_21, %c0_22, %c0_23] : memref<1x32x2xf32, #tpu.memory_space<vmem>>, vector<1x32x2xf32>
    %28 = vector.shape_cast %27 : vector<1x32x2xf32> to vector<32x2xf32>
    %29 = vector.shape_cast %26 : vector<32x2xf32> to vector<1x32x2xf32>
    tpu.vector_store %arg7[%c0_21, %c0_22, %c0_23], %29 {strides = array<i32>} : memref<1x32x2xf32, #tpu.memory_space<vmem>>, vector<1x32x2xf32>,
    %c0_24 = arith.constant 0 : index
    %c0_25 = arith.constant 0 : index
    %30 = vector.load %arg4[%c0_24, %c0_25] : memref<8x32xf32, #tpu.memory_space<vmem>>, vector<8x32xf32>
    %cst_26 = arith.constant dense<0.000000e+00> : vector<8x2xf32>
    %31 = tpu.matmul %30, %26, %cst_26 {dimension_numbers = #tpu.dot_dimension_numbers<[1], [0], [0], [1], [0, 0, 1, 1], [], []>} : vector<8x32xf32>, vector<32x2xf32>, vector<8x2xf32> -> vector<8x2xf32>
    %c0_27 = arith.constant 0 : index
    %c0_28 = arith.constant 0 : index
    %32 = vector.load %arg5[%c0_27, %c0_28] : memref<8x1xf32, #tpu.memory_space<vmem>>, vector<8x1xf32>
    %33 = vector.broadcast %32 : vector<8x1xf32> to vector<8x2xf32>
    %34 = arith.addf %31, %33 : vector<8x2xf32>
    %cst_29 = arith.constant dense<0xFF800000> : vector<2xf32>
    %35 = vector.multi_reduction <maximumf>, %34, %cst_29 [0] : vector<8x2xf32> to vector<2xf32>
    %36 = vector.shape_cast %35 : vector<2xf32> to vector<1x2xf32>
    %37 = vector.broadcast %36 : vector<1x2xf32> to vector<8x2xf32>
    %38 = arith.subf %34, %37 : vector<8x2xf32>
    %39 = math.exp %38 : vector<8x2xf32>
    %cst_30 = arith.constant dense<0.000000e+00> : vector<2xf32>
    %40 = vector.multi_reduction <add>, %39, %cst_30 [0] : vector<8x2xf32> to vector<2xf32>
    %41 = vector.shape_cast %40 : vector<2xf32> to vector<1x2xf32>
    %42 = vector.broadcast %41 : vector<1x2xf32> to vector<8x2xf32>
    %43 = arith.divf %39, %42 : vector<8x2xf32>
    %c0_31 = arith.constant 0 : index
    %c0_32 = arith.constant 0 : index
    %c0_33 = arith.constant 0 : index
    %44 = vector.load %arg8[%c0_31, %c0_32, %c0_33] : memref<1x8x2xf32, #tpu.memory_space<vmem>>, vector<1x8x2xf32>
    %45 = vector.shape_cast %44 : vector<1x8x2xf32> to vector<8x2xf32>
    %46 = vector.shape_cast %43 : vector<8x2xf32> to vector<1x8x2xf32>
    tpu.vector_store %arg8[%c0_31, %c0_32, %c0_33], %46 {strides = array<i32>} : memref<1x8x2xf32, #tpu.memory_space<vmem>>, vector<1x8x2xf32>,
    return
  }
  func.func @transform_0(%arg0: i32) -> (i32, i32) {
    %c0_i32 = arith.constant 0 : i32
    %c0_i32_0 = arith.constant 0 : i32
    return %c0_i32, %arg0 : i32, i32
  }
  func.func @transform_1(%arg0: i32) -> (i32, i32) {
    %c0_i32 = arith.constant 0 : i32
    %c0_i32_0 = arith.constant 0 : i32
    %c0_i32_1 = arith.constant 0 : i32
    return %c0_i32, %c0_i32_0 : i32, i32
  }
  func.func @transform_2(%arg0: i32) -> (i32, i32) {
    %c0_i32 = arith.constant 0 : i32
    %c0_i32_0 = arith.constant 0 : i32
    %c0_i32_1 = arith.constant 0 : i32
    return %c0_i32, %c0_i32_0 : i32, i32
  }
  func.func @transform_3(%arg0: i32) -> (i32, i32) {
    %c0_i32 = arith.constant 0 : i32
    %c0_i32_0 = arith.constant 0 : i32
    %c0_i32_1 = arith.constant 0 : i32
    return %c0_i32, %c0_i32_0 : i32, i32
  }
  func.func @transform_4(%arg0: i32) -> (i32, i32) {
    %c0_i32 = arith.constant 0 : i32
    %c0_i32_0 = arith.constant 0 : i32
    %c0_i32_1 = arith.constant 0 : i32
    return %c0_i32, %c0_i32_0 : i32, i32
  }
  func.func @transform_5(%arg0: i32) -> (i32, i32, i32) {
    %c0_i32 = arith.constant 0 : i32
    %c0_i32_0 = arith.constant 0 : i32
    %c0_i32_1 = arith.constant 0 : i32
    return %arg0, %c0_i32, %c0_i32_0 : i32, i32, i32
  }
  func.func @transform_6(%arg0: i32) -> (i32, i32, i32) {
    %c0_i32 = arith.constant 0 : i32
    %c0_i32_0 = arith.constant 0 : i32
    %c0_i32_1 = arith.constant 0 : i32
    return %arg0, %c0_i32, %c0_i32_0 : i32, i32, i32
  }
  func.func @transform_7(%arg0: i32) -> (i32, i32, i32) {
    %c0_i32 = arith.constant 0 : i32
    %c0_i32_0 = arith.constant 0 : i32
    %c0_i32_1 = arith.constant 0 : i32
    return %arg0, %c0_i32, %c0_i32_0 : i32, i32, i32
  }
}

</mosaic_0001>

<llo_original>
// kernel: _lambda_.1
$region0: #{_lambda_.1}
  #allocation0 [shape = 'u32[]', space=smem, size = 0x4, offset = 0x4, fixed_abs, tag = 'smem constant byte address 0x4 - core index']
  #allocation1 [shape = 'u32[72,128]{1,0:T(1,128)}', space=vmem, size = 0x9000, scoped, tag = 'internal scratch']
  #allocation2 [shape = 'f32[32,2]{1,0:T(8,128)}', space=vmem, size = 0x4000, scoped, tag = 'scratch operand']
  %s0 = inlined_call_operand.vmem [shape: bf16[36,512], index: 0, kind: input, shape index: {}]
  %s1 = inlined_call_operand.vmem [shape: bf16[32,36], index: 1, kind: input, shape index: {}]
  %s2 = inlined_call_operand.vmem [shape: f32[32,1], index: 2, kind: input, shape index: {}]
  %s3 = inlined_call_operand.vmem [shape: f32[8,32], index: 3, kind: input, shape index: {}]
  %s4 = inlined_call_operand.vmem [shape: f32[8,1], index: 4, kind: input, shape index: {}]
  %s5 = inlined_call_operand.vmem [shape: f32[2,32,256], index: 5, kind: output, shape index: {0}]
  %s6 = inlined_call_operand.vmem [shape: f32[1,32,2], index: 6, kind: output, shape index: {1}]
  %s7 = inlined_call_operand.vmem [shape: f32[1,8,2], index: 7, kind: output, shape index: {2}]
  %8 = xla_tuple %s5, %s6, %s7
  %s9 = sld [smem:[#allocation0]]
  $region46: #{_lambda_.1} parent=0
    _
  %s11 = ssub.s32 1, %s9
  %s12 = scalar_select 0, %s11, %s9
  // Predicated region
  $region2: #{_lambda_.1} parent=0 // pred_check
    _
  $region3: #{_lambda_.1} parent=0 // pred_check_branch
    %14 = sbr.rel (0) target = $region5
  $region4: #{_lambda_.1} parent=0 // pred_region
    _
  $region5: #{_lambda_.1} parent=0 // pred_fallthru
    _
  // Predicated region
  $region6: #{_lambda_.1} parent=0 // pred_check
    _
  $region7: #{_lambda_.1} parent=0 // pred_check_branch
    %16 = sbr.rel (0) target = $region9
  $region8: #{_lambda_.1} parent=0 // pred_region
    _
  $region9: #{_lambda_.1} parent=0 // pred_fallthru
    _
  // Predicated region
  $region10: #{_lambda_.1} parent=0 // pred_check
    _
  $region11: #{_lambda_.1} parent=0 // pred_check_branch
    %18 = sbr.rel (0) target = $region13
  $region12: #{_lambda_.1} parent=0 // pred_region
    _
  $region13: #{_lambda_.1} parent=0 // pred_fallthru
    _
  // Predicated region
  $region14: #{_lambda_.1} parent=0 // pred_check
    _
  $region15: #{_lambda_.1} parent=0 // pred_check_branch
    %20 = sbr.rel (0) target = $region17
  $region16: #{_lambda_.1} parent=0 // pred_region
    _
  $region17: #{_lambda_.1} parent=0 // pred_fallthru
    _
  // Predicated region
  $region18: #{_lambda_.1} parent=0 // pred_check
    _
  $region19: #{_lambda_.1} parent=0 // pred_check_branch
    %22 = sbr.rel (0) target = $region21
  $region20: #{_lambda_.1} parent=0 // pred_region
    _
  $region21: #{_lambda_.1} parent=0 // pred_fallthru
    _
  %v24 = vld [vmem:[%s1] sm:$0xf]
  %v25 = vld [vmem:[%s1 + $0x4] sm:$0xf]
  %v26 = vld [vmem:[%s1 + $0x8] sm:$0xf]
  %v27 = vld [vmem:[%s1 + $0xc] sm:$0xf]
  %v28 = vld [vmem:[%s0] sm:$0xff]
  %v29 = vld [vmem:[%s0 + $0x8] sm:$0xff]
  %v30 = vld [vmem:[%s0 + $0x10] sm:$0xff]
  %v31 = vld [vmem:[%s0 + $0x18] sm:$0xff]
  %v32 = vld [vmem:[%s0 + $0x20] sm:$0xff]
  %v33 = vld [vmem:[%s0 + $0x28] sm:$0xff]
  %v34 = vld [vmem:[%s0 + $0x30] sm:$0xff]
  %v35 = vld [vmem:[%s0 + $0x38] sm:$0xff]
  %v36 = vld [vmem:[%s0 + $0x40] sm:$0x33]
  %v37 = vld [vmem:[%s0 + $0x48] sm:$0x33]
  %v38 = vld [vmem:[%s2] sm:$0xff]
  %v39 = vld [vmem:[%s2 + $0x8] sm:$0xff]
  %v40 = vld [vmem:[%s2 + $0x10] sm:$0xff]
  %v41 = vld [vmem:[%s2 + $0x18] sm:$0xff]
  %43 = vset.pattern.permute.xlu0 0
  %44 = vperm.xlu0 %43, %v38
  %v45 = vpop.permute.xlu0 %44
  %48 = vset.pattern.permute.xlu0 0
  %49 = vperm.xlu0 %48, %v39
  %v50 = vpop.permute.xlu0 %49
  %53 = vset.pattern.permute.xlu0 0
  %54 = vperm.xlu0 %53, %v40
  %v55 = vpop.permute.xlu0 %54
  %58 = vset.pattern.permute.xlu0 0
  %59 = vperm.xlu0 %58, %v41
  %v60 = vpop.permute.xlu0 %59
  %v66 = vunpack.c.l.b16 %v24
  %v67 = vunpack.c.l.b16 %v25
  %v68 = vunpack.c.l.b16 %v26
  %v69 = vunpack.c.l.b16 %v27
  %v70 = vpack.c.b16 %v67, %v66
  %v71 = vpack.c.b16 %v69, %v68
  %v82 = vunpack.c.l.b16 %v28
  %v83 = vunpack.c.h.b16 %v28
  %v84 = vunpack.c.l.b16 %v29
  %v85 = vunpack.c.h.b16 %v29
  %v86 = vunpack.c.l.b16 %v30
  %v87 = vunpack.c.h.b16 %v30
  %v88 = vunpack.c.l.b16 %v31
  %v89 = vunpack.c.h.b16 %v31
  %v90 = vunpack.c.l.b16 %v32
  %v91 = vunpack.c.h.b16 %v32
  %v92 = vunpack.c.l.b16 %v33
  %v93 = vunpack.c.h.b16 %v33
  %v94 = vunpack.c.l.b16 %v34
  %v95 = vunpack.c.h.b16 %v34
  %v96 = vunpack.c.l.b16 %v35
  %v97 = vunpack.c.h.b16 %v35
  %v98 = vunpack.c.l.b16 %v36
  %v99 = vunpack.c.h.b16 %v36
  %v100 = vunpack.c.l.b16 %v37
  %v101 = vunpack.c.h.b16 %v37
  %v102 = vpack.c.b16 %v86, %v82
  %v103 = vpack.c.b16 %v87, %v83
  %v104 = vpack.c.b16 %v88, %v84
  %v105 = vpack.c.b16 %v89, %v85
  %v106 = vpack.c.b16 %v94, %v90
  %v107 = vpack.c.b16 %v95, %v91
  %v108 = vpack.c.b16 %v96, %v92
  %v109 = vpack.c.b16 %v97, %v93
  %v110 = vpack.c.b16 %v98, %v98
  %v111 = vpack.c.b16 %v99, %v99
  %v112 = vpack.c.b16 %v100, %v100
  %v113 = vpack.c.b16 %v101, %v101
  %vm122 = vcmask 293888
  %v124 = vsel %vm122, %v70, 0
  %v127 = vsel %vm122, %v71, 0
  %vm129 = vcmask 1041408
  %v131 = vsel %vm129, %v110, 0
  %v134 = vsel %vm129, %v111, 0
  %v137 = vsel %vm129, %v112, 0
  %v140 = vsel %vm129, %v113, 0
  %142 = vmatpush.bf16.msra.mxu0 0
  %143 = vmatpush.bf16.msra.mxu0 0
  %144 = vmatpush.bf16.msra.mxu0 0
  %145 = vmatpush.bf16.msra.mxu0 0
  %146 = vmatpush.bf16.msra.mxu0 0
  %147 = vmatpush.bf16.msra.mxu0 %v131
  %148 = vmatpush.bf16.msra.mxu0 %v106
  %149 = vmatpush.bf16.msra.mxu0 %v102
  %150 = vmatmul.bf16.gmra.mxu0 %v124
  %v151 = vpop.f32.mrf.mxu0
  %v152 = vadd.f32 %v45, %v151
  %v153 = vpop.f32.mrf.mxu0
  %v154 = vadd.f32 %v50, %v153
  %155 = vmatmul.bf16.gmra.mxu0 %v127
  %v156 = vpop.f32.mrf.mxu0
  %v157 = vadd.f32 %v55, %v156
  %v158 = vpop.f32.mrf.mxu0
  %v159 = vadd.f32 %v60, %v158
  %160 = vdwg.mxu0
  %161 = vmatpush.bf16.msra.mxu0 0
  %162 = vmatpush.bf16.msra.mxu0 0
  %163 = vmatpush.bf16.msra.mxu0 0
  %164 = vmatpush.bf16.msra.mxu0 0
  %165 = vmatpush.bf16.msra.mxu0 0
  %166 = vmatpush.bf16.msra.mxu0 %v134
  %167 = vmatpush.bf16.msra.mxu0 %v107
  %168 = vmatpush.bf16.msra.mxu0 %v103
  %169 = vmatmul.bf16.gmra.mxu0 %v124
  %v170 = vpop.f32.mrf.mxu0
  %v171 = vadd.f32 %v45, %v170
  %v172 = vpop.f32.mrf.mxu0
  %v173 = vadd.f32 %v50, %v172
  %174 = vmatmul.bf16.gmra.mxu0 %v127
  %v175 = vpop.f32.mrf.mxu0
  %v176 = vadd.f32 %v55, %v175
  %v177 = vpop.f32.mrf.mxu0
  %v178 = vadd.f32 %v60, %v177
  %179 = vdwg.mxu0
  %180 = vmatpush.bf16.msra.mxu0 0
  %181 = vmatpush.bf16.msra.mxu0 0
  %182 = vmatpush.bf16.msra.mxu0 0
  %183 = vmatpush.bf16.msra.mxu0 0
  %184 = vmatpush.bf16.msra.mxu0 0
  %185 = vmatpush.bf16.msra.mxu0 %v137
  %186 = vmatpush.bf16.msra.mxu0 %v108
  %187 = vmatpush.bf16.msra.mxu0 %v104
  %188 = vmatmul.bf16.gmra.mxu0 %v124
  %v189 = vpop.f32.mrf.mxu0
  %v190 = vadd.f32 %v45, %v189
  %v191 = vpop.f32.mrf.mxu0
  %v192 = vadd.f32 %v50, %v191
  %193 = vmatmul.bf16.gmra.mxu0 %v127
  %v194 = vpop.f32.mrf.mxu0
  %v195 = vadd.f32 %v55, %v194
  %v196 = vpop.f32.mrf.mxu0
  %v197 = vadd.f32 %v60, %v196
  %198 = vdwg.mxu0
  %199 = vmatpush.bf16.msra.mxu0 0
  %200 = vmatpush.bf16.msra.mxu0 0
  %201 = vmatpush.bf16.msra.mxu0 0
  %202 = vmatpush.bf16.msra.mxu0 0
  %203 = vmatpush.bf16.msra.mxu0 0
  %204 = vmatpush.bf16.msra.mxu0 %v140
  %205 = vmatpush.bf16.msra.mxu0 %v109
  %206 = vmatpush.bf16.msra.mxu0 %v105
  %207 = vmatmul.bf16.gmra.mxu0 %v124
  %v208 = vpop.f32.mrf.mxu0
  %v209 = vadd.f32 %v45, %v208
  %v210 = vpop.f32.mrf.mxu0
  %v211 = vadd.f32 %v50, %v210
  %212 = vmatmul.bf16.gmra.mxu0 %v127
  %v213 = vpop.f32.mrf.mxu0
  %v214 = vadd.f32 %v55, %v213
  %v215 = vpop.f32.mrf.mxu0
  %v216 = vadd.f32 %v60, %v215
  %217 = vdwg.mxu0
  %v218 = vmax.f32 %v152, 0.0
  %v219 = vmax.f32 %v171, 0.0
  %v220 = vmax.f32 %v190, 0.0
  %v221 = vmax.f32 %v209, 0.0
  %v222 = vmax.f32 %v154, 0.0
  %v223 = vmax.f32 %v173, 0.0
  %v224 = vmax.f32 %v192, 0.0
  %v225 = vmax.f32 %v211, 0.0
  %v226 = vmax.f32 %v157, 0.0
  %v227 = vmax.f32 %v176, 0.0
  %v228 = vmax.f32 %v195, 0.0
  %v229 = vmax.f32 %v214, 0.0
  %v230 = vmax.f32 %v159, 0.0
  %v231 = vmax.f32 %v178, 0.0
  %v232 = vmax.f32 %v197, 0.0
  %v233 = vmax.f32 %v216, 0.0
  %234 = vst [vmem:[%s5] sm:$0xff] %v218
  %235 = vst [vmem:[%s5 + $0x8] sm:$0xff] %v219
  %236 = vst [vmem:[%s5 + $0x10] sm:$0xff] %v222
  %237 = vst [vmem:[%s5 + $0x18] sm:$0xff] %v223
  %238 = vst [vmem:[%s5 + $0x20] sm:$0xff] %v226
  %239 = vst [vmem:[%s5 + $0x28] sm:$0xff] %v227
  %240 = vst [vmem:[%s5 + $0x30] sm:$0xff] %v230
  %241 = vst [vmem:[%s5 + $0x38] sm:$0xff] %v231
  %v242 = vadd.f32 %v218, %v219
  %243 = vadd.xlane.f32.xlu0 %v242
  %v244 = vpop.xlane.xlu0 %243
  %v245 = vadd.f32 %v222, %v223
  %246 = vadd.xlane.f32.xlu0 %v245
  %v247 = vpop.xlane.xlu0 %246
  %v248 = vadd.f32 %v226, %v227
  %249 = vadd.xlane.f32.xlu0 %v248
  %v250 = vpop.xlane.xlu0 %249
  %v251 = vadd.f32 %v230, %v231
  %252 = vadd.xlane.f32.xlu0 %v251
  %v253 = vpop.xlane.xlu0 %252
  %v254 = vrcp.pop 256.0
  %v255 = vmul.f32 256.0, %v254
  %v256 = vsub.f32 1.0, %v255
  %v257 = vmul.f32 %v254, %v256
  %v258 = vadd.f32 %v254, %v257
  %vm259 = vweird.f32 %v254
  %v260 = vsel %vm259, %v254, %v258
  %v261 = vmul.f32 %v244, %v260
  %v262 = vmul.f32 %v247, %v260
  %v263 = vmul.f32 %v250, %v260
  %v264 = vmul.f32 %v253, %v260
  %vm265 = vcmask 7168
  %266 = vst.msk [vmem:[#allocation2] sm:$0xff] %vm265, %v261
  %267 = vst.msk [vmem:[#allocation2 + $0x8] sm:$0xff] %vm265, %v262
  %268 = vst.msk [vmem:[#allocation2 + $0x10] sm:$0xff] %vm265, %v263
  %269 = vst.msk [vmem:[#allocation2 + $0x18] sm:$0xff] %vm265, %v264
  %s270 = scalar_lea.vmem %s5, 64
  %271 = vst [vmem:[%s270] sm:$0xff] %v220
  %272 = vst [vmem:[%s270 + $0x8] sm:$0xff] %v221
  %273 = vst [vmem:[%s270 + $0x10] sm:$0xff] %v224
  %274 = vst [vmem:[%s270 + $0x18] sm:$0xff] %v225
  %275 = vst [vmem:[%s270 + $0x20] sm:$0xff] %v228
  %276 = vst [vmem:[%s270 + $0x28] sm:$0xff] %v229
  %277 = vst [vmem:[%s270 + $0x30] sm:$0xff] %v232
  %278 = vst [vmem:[%s270 + $0x38] sm:$0xff] %v233
  %v279 = vadd.f32 %v220, %v221
  %280 = vadd.xlane.f32.xlu0 %v279
  %v281 = vpop.xlane.xlu0 %280
  %v282 = vadd.f32 %v224, %v225
  %283 = vadd.xlane.f32.xlu0 %v282
  %v284 = vpop.xlane.xlu0 %283
  %v285 = vadd.f32 %v228, %v229
  %286 = vadd.xlane.f32.xlu0 %v285
  %v287 = vpop.xlane.xlu0 %286
  %v288 = vadd.f32 %v232, %v233
  %289 = vadd.xlane.f32.xlu0 %v288
  %v290 = vpop.xlane.xlu0 %289
  %v291 = vmul.f32 %v281, %v260
  %v292 = vmul.f32 %v284, %v260
  %v293 = vmul.f32 %v287, %v260
  %v294 = vmul.f32 %v290, %v260
  %vm295 = vcmask 15368
  %296 = vst.msk [vmem:[#allocation2] sm:$0xff] %vm295, %v291
  %297 = vst.msk [vmem:[#allocation2 + $0x8] sm:$0xff] %vm295, %v292
  %298 = vst.msk [vmem:[#allocation2 + $0x10] sm:$0xff] %vm295, %v293
  %299 = vst.msk [vmem:[#allocation2 + $0x18] sm:$0xff] %vm295, %v294
  %v300 = vld [vmem:[#allocation2] sm:$0xff]
  %v301 = vld [vmem:[#allocation2 + $0x8] sm:$0xff]
  %v302 = vld [vmem:[#allocation2 + $0x10] sm:$0xff]
  %v303 = vld [vmem:[#allocation2 + $0x18] sm:$0xff]
  %vm304 = vcmask 15360
  %305 = vst.msk [vmem:[%s6] sm:$0xff] %vm304, %v300
  %306 = vst.msk [vmem:[%s6 + $0x8] sm:$0xff] %vm304, %v301
  %307 = vst.msk [vmem:[%s6 + $0x10] sm:$0xff] %vm304, %v302
  %308 = vst.msk [vmem:[%s6 + $0x18] sm:$0xff] %vm304, %v303
  %v309 = vld [vmem:[%s3] sm:$0xff]
  %v310 = vld [vmem:[%s4] sm:$0xff]
  %312 = vset.pattern.permute.xlu0 0
  %313 = vperm.xlu0 %312, %v310
  %v314 = vpop.permute.xlu0 %313
  %vm316 = vcmask 261120
  %v318 = vsel %vm316, %v309, 0
  %320 = vmatpush.msra.mxu0 0.0
  %321 = vmatpush.msra.mxu0 0.0
  %322 = vmatpush.msra.mxu0 0.0
  %323 = vmatpush.msra.mxu0 0.0
  %324 = vmatpush.msra.mxu0 0.0
  %325 = vmatpush.msra.mxu0 0.0
  %326 = vmatpush.msra.mxu0 0.0
  %327 = vmatpush.msra.mxu0 0.0
  %328 = vmatpush.msra.mxu0 0.0
  %329 = vmatpush.msra.mxu0 0.0
  %330 = vmatpush.msra.mxu0 0.0
  %331 = vmatpush.msra.mxu0 0.0
  %332 = vmatpush.msra.mxu0 %v303
  %333 = vmatpush.msra.mxu0 %v302
  %334 = vmatpush.msra.mxu0 %v301
  %335 = vmatpush.msra.mxu0 %v300
  %336 = vmatmul.f32.gmra.mxu0 %v318
  %v337 = vpop.f32.mrf.mxu0
  %v338 = vadd.f32 %v314, %v337
  %339 = vdwg.mxu0
  %v340 = vsel %vm304, %v338, -inf
  %v341 = vrot.slane %v340, 4
  %v342 = vmax.f32 %v340, %v341
  %v343 = vrot.slane %v342, 2
  %v344 = vmax.f32 %v342, %v343
  %v345 = vrot.slane %v344, 1
  %v346 = vmax.f32 %v344, %v345
  %v347 = vsub.f32 %v338, %v346
  %v348 = vmul.f32 %v347, 1.442695
  %v349 = vpow.pop %v348
  %v350 = vsel %vm304, %v349, 0.0
  %v351 = vrot.slane %v350, 4
  %v352 = vadd.f32 %v350, %v351
  %v353 = vrot.slane %v352, 2
  %v354 = vadd.f32 %v352, %v353
  %v355 = vrot.slane %v354, 1
  %v356 = vadd.f32 %v354, %v355
  %v357 = vrcp.pop %v356
  %v358 = vmul.f32 %v356, %v357
  %v359 = vsub.f32 1.0, %v358
  %v360 = vmul.f32 %v357, %v359
  %v361 = vadd.f32 %v357, %v360
  %vm362 = vweird.f32 %v356
  %vm363 = vweird.f32 %v357
  %vm364 = vmor %vm362, %vm363
  %v365 = vsel %vm364, %v357, %v361
  %v366 = vand.u32 2147483647, %v356
  %vm367 = vcmp.eq.f32.partialorder %v366, 8.507059e+37
  %v368 = vand.u32 %v356, 2147483648
  %v369 = vor.u32 1.1754944e-38, %v368
  %v370 = vsel %vm367, %v369, %v365
  %v371 = vmul.f32 %v349, %v370
  %372 = vst.msk [vmem:[%s7] sm:$0xff] %vm304, %v371
  // Predicated region
  $region22: #{_lambda_.1} parent=0 // pred_check
    _
  $region23: #{_lambda_.1} parent=0 // pred_check_branch
    %374 = sbr.rel (0) target = $region25
  $region24: #{_lambda_.1} parent=0 // pred_region
    _
  $region25: #{_lambda_.1} parent=0 // pred_fallthru
    _
  // Predicated region
  $region26: #{_lambda_.1} parent=0 // pred_check
    _
  $region27: #{_lambda_.1} parent=0 // pred_check_branch
    %376 = sbr.rel (0) target = $region29
  $region28: #{_lambda_.1} parent=0 // pred_region
    _
  $region29: #{_lambda_.1} parent=0 // pred_fallthru
    _
  // Predicated region
  $region30: #{_lambda_.1} parent=0 // pred_check
    _
  $region31: #{_lambda_.1} parent=0 // pred_check_branch
    %378 = sbr.rel (0) target = $region33
  $region32: #{_lambda_.1} parent=0 // pred_region
    _
  $region33: #{_lambda_.1} parent=0 // pred_fallthru
    _
  // Predicated region
  $region34: #{_lambda_.1} parent=0 // pred_check
    _
  $region35: #{_lambda_.1} parent=0 // pred_check_branch
    %380 = sbr.rel (0) target = $region37
  $region36: #{_lambda_.1} parent=0 // pred_region
    _
  $region37: #{_lambda_.1} parent=0 // pred_fallthru
    _
  // Predicated region
  $region38: #{_lambda_.1} parent=0 // pred_check
    _
  $region39: #{_lambda_.1} parent=0 // pred_check_branch
    %382 = sbr.rel (0) target = $region41
  $region40: #{_lambda_.1} parent=0 // pred_region
    _
  $region41: #{_lambda_.1} parent=0 // pred_fallthru
    _
  // Predicated region
  $region42: #{_lambda_.1} parent=0 // pred_check
    _
  $region43: #{_lambda_.1} parent=0 // pred_check_branch
    %384 = sbr.rel (0) target = $region45
  $region44: #{_lambda_.1} parent=0 // pred_region
    _
  $region45: #{_lambda_.1} parent=0 // pred_fallthru
    _

</llo_original>
